<compile_context>
chip_gen: v5e
topology: v5e:2x2
jax: 0.10.0
libtpu: 0.0.40
codegen_flags: <defaults>
</compile_context>

<pallas_src>
import jax
import jax.numpy as jnp
from jax.experimental import pallas as pl
from jax.experimental.pallas import tpu as pltpu

BN_EPS = 1e-5


def _pass1_kernel(x_ref, w1_ref, h_ref, sum_ref, sumsq_ref):
    # In-kernel bf16 cast of the f32 x tile (hidden under the MXU; avoids a
    # separate wrapper-level XLA astype that round-trips x through HBM).
    x = x_ref[...].astype(jnp.bfloat16)

    # [TM, Din] bf16 @ [Din, H] bf16 -> [TM, H] f32 on the MXU.
    h = jnp.dot(x, w1_ref[...], preferred_element_type=jnp.float32)

    # Per-tile partial batch statistics, computed from the f32 h BEFORE the
    # bf16 cast.  Each grid step owns its own [1,1,H] block, so the batch
    # axis stays "parallel" (megacore on v7x) and the cross-tile reduction
    # happens tree-style in the wrapper.
    sum_ref[...] = jnp.sum(h, axis=0, keepdims=True)[None]
    sumsq_ref[...] = jnp.sum(h * h, axis=0, keepdims=True)[None]

    # Store h in bf16: halves pass-1 writeback and the HBM-bound pass-2 read.
    h_ref[...] = h.astype(jnp.bfloat16)


def _pass2_kernel(h_ref, scale_ref, shift_ref, w2_ref, b2_ref, o_ref):
    # BN (folded into scale/shift) + ReLU in f32 on the VPU, then the second
    # matmul in bf16 on the MXU with f32 accumulation.
    h = h_ref[...].astype(jnp.float32)
    a = jnp.maximum(h * scale_ref[...] + shift_ref[...], 0.0)
    out = jnp.dot(a.astype(jnp.bfloat16), w2_ref[...],
                  preferred_element_type=jnp.float32)
    o_ref[...] = (out + b2_ref[...]).astype(o_ref.dtype)


def _pick_tiling():
    """Generation-adaptive (tile_rows, scoped VMEM limit).

    128 MiB VMEM (v5e / v6e) -> tm=512, 96 MiB limit (bigger tiles push the
    HBM-bound pass 2 toward roofline and amortize per-step overhead).
    64 MiB VMEM (v7x)        -> tm=256, 48 MiB limit (resident bf16 weights +
    double-buffered tiles fit with headroom).
    """
    vmem = 64 << 20  # conservative default (v7x)
    try:
        info = pltpu.get_tpu_info()
        vmem = int(getattr(info, "vmem_capacity_bytes", vmem))
    except Exception:
        pass
    if vmem >= (100 << 20):
        return 512, 96 << 20
    return 256, 48 << 20


def mlp_forward(x, w1_t, gamma, beta, w2_t, b2, *, tm=None):
    """x: [B, Din] f32; w1_t: [Din, H]; w2_t: [H, Dout]; gamma/beta: [1, H];
    b2: [1, Dout].  Weights are pre-transposed (PyTorch stores [out, in])."""
    B, Din = x.shape
    H = w1_t.shape[1]
    Dout = w2_t.shape[1]

    auto_tm, vmem_limit = _pick_tiling()
    if tm is None:
        tm = auto_tm

    # Pad the batch (still f32) to a multiple of the tile.  Zero rows give
    # h == 0 and contribute nothing to sum / sumsq; the divisor stays B.
    Bp = ((B + tm - 1) // tm) * tm
    if Bp != B:
        x = jnp.pad(x, ((0, Bp - B), (0, 0)))
    nbt = Bp // tm

    w1_bf = w1_t.astype(jnp.bfloat16)
    w2_bf = w2_t.astype(jnp.bfloat16)

    # ---- pass 1: x @ w1 (bf16 out) + per-tile partial sum / sum-of-squares --
    h, hsum_p, hsq_p = pl.pallas_call(
        _pass1_kernel,
        grid=(nbt,),
        in_specs=[
            pl.BlockSpec((tm, Din), lambda i: (i, 0)),      # x tile (f32)
            pl.BlockSpec((Din, H), lambda i: (0, 0)),       # w1 resident bf16
        ],
        out_specs=(
            pl.BlockSpec((tm, H), lambda i: (i, 0)),        # h tile (bf16)
            pl.BlockSpec((1, 1, H), lambda i: (i, 0, 0)),   # per-tile sum
            pl.BlockSpec((1, 1, H), lambda i: (i, 0, 0)),   # per-tile sumsq
        ),
        out_shape=(
            jax.ShapeDtypeStruct((Bp, H), jnp.bfloat16),
            jax.ShapeDtypeStruct((nbt, 1, H), jnp.float32),
            jax.ShapeDtypeStruct((nbt, 1, H), jnp.float32),
        ),
        compiler_params=pltpu.CompilerParams(
            dimension_semantics=("parallel",),   # no revisited blocks anymore
            vmem_limit_bytes=vmem_limit,
        ),
    )(x, w1_bf)

    # ---- tiny stats fold in plain JAX (f32) ---------------------------------
    count = jnp.float32(B)
    hsum = jnp.sum(hsum_p, axis=0)           # [1, H]
    hsq = jnp.sum(hsq_p, axis=0)              # [1, H]
    mean = hsum / count
    # Note: E[h^2] - E[h]^2 can cancel when |mean| >> std; strict PyTorch
    # parity would need per-tile centered stats (Chan's formula).
    var = jnp.maximum(hsq / count - mean * mean, 0.0)   # biased, train-mode BN
    inv_std = jax.lax.rsqrt(var + BN_EPS)
    scale = gamma * inv_std                  # [1, H]
    shift = beta - mean * scale              # [1, H]

    # ---- pass 2: BN-apply + ReLU + second matmul + bias ---------------------
    out = pl.pallas_call(
        _pass2_kernel,
        grid=(nbt,),
        in_specs=[
            pl.BlockSpec((tm, H), lambda i: (i, 0)),        # h tile (bf16)
            pl.BlockSpec((1, H), lambda i: (0, 0)),         # scale resident
            pl.BlockSpec((1, H), lambda i: (0, 0)),         # shift resident
            pl.BlockSpec((H, Dout), lambda i: (0, 0)),      # w2 resident bf16
            pl.BlockSpec((1, Dout), lambda i: (0, 0)),      # bias resident
        ],
        out_specs=pl.BlockSpec((tm, Dout), lambda i: (i, 0)),
        out_shape=jax.ShapeDtypeStruct((Bp, Dout), jnp.float32),
        compiler_params=pltpu.CompilerParams(
            dimension_semantics=("parallel",),
            vmem_limit_bytes=vmem_limit,
        ),
    )(h, scale, shift, w2_bf, b2)

    return out[:B]


def mlp_reference(x, w1_t, gamma, beta, w2_t, b2):
    h = x @ w1_t
    mean = h.mean(axis=0, keepdims=True)
    var = ((h - mean) ** 2).mean(axis=0, keepdims=True)
    h = (h - mean) * jax.lax.rsqrt(var + BN_EPS) * gamma + beta
    h = jnp.maximum(h, 0.0)
    return h @ w2_t + b2


if __name__ == "__main__":
    # Small, module-consistent shapes (module defaults are 2048 / 4096 / 256).
    D_IN, HIDDEN, D_OUT = 256, 512, 256

    key = jax.random.PRNGKey(0)
    kx, kw1, kg, kb, kw2, kb2 = jax.random.split(key, 6)

    # nn.Linear stores weight as [out, in]; we keep the transposed [in, out].
    w1_t = jax.random.normal(kw1, (D_IN, HIDDEN), jnp.float32) * (D_IN ** -0.5)
    gamma = 1.0 + 0.1 * jax.random.normal(kg, (1, HIDDEN), jnp.float32)
    beta = 0.1 * jax.random.normal(kb, (1, HIDDEN), jnp.float32)
    w2_t = jax.random.normal(kw2, (HIDDEN, D_OUT), jnp.float32) * (HIDDEN ** -0.5)
    b2 = 0.1 * jax.random.normal(kb2, (1, D_OUT), jnp.float32)

    # B=200 exercises batch padding + multi-tile partial-stat reduction;
    # B=256 is the exact-multiple path; tm=None exercises the auto-tiling path.
    for B, tm in ((200, 128), (256, 128), (256, None)):
        x = jax.random.normal(jax.random.fold_in(kx, B), (B, D_IN), jnp.float32)
        out = jax.block_until_ready(
            mlp_forward(x, w1_t, gamma, beta, w2_t, b2, tm=tm))
        ref = mlp_reference(x, w1_t, gamma, beta, w2_t, b2)
        assert out.shape == (B, D_OUT)
        # bf16 MXU operands + bf16-stored h -> tolerance looser than pure f32.
        err = float(jnp.max(jnp.abs(out - ref)))
        assert jnp.allclose(out, ref, atol=5e-2, rtol=5e-2), (
            f"mismatch vs reference at B={B}, tm={tm}: max abs err {err:.3e}")

    print("KERNEL_OK")
</pallas_src>

<mosaic_0001>
module attributes {stable_mosaic.version = 11 : i64} {
  func.func @_pass1_kernel(%arg0: i32, %arg1: memref<128x256xf32, #tpu.memory_space<vmem>>, %arg2: memref<256x512xbf16, #tpu.memory_space<vmem>>, %arg3: memref<128x512xbf16, #tpu.memory_space<vmem>>, %arg4: memref<1x1x512xf32, #tpu.memory_space<vmem>>, %arg5: memref<1x1x512xf32, #tpu.memory_space<vmem>>) attributes {dimension_semantics = [#tpu.dimension_semantics<parallel>], iteration_bounds = array<i64: 2>, scalar_prefetch = 0 : i64, scratch_operands = 0 : i64, tpu.core_type = #tpu.core_type<tc>, window_params = [{transform_indices = @transform_0, window_bounds = array<i64: 128, 256>}, {pipeline_mode = #tpu.pipeline_mode<synchronous>, transform_indices = @transform_1, window_bounds = array<i64: 256, 512>}, {transform_indices = @transform_2, window_bounds = array<i64: 128, 512>}, {transform_indices = @transform_3, window_bounds = array<i64: 1, 1, 512>}, {transform_indices = @transform_4, window_bounds = array<i64: 1, 1, 512>}]} {
    %c0 = arith.constant 0 : index
    %c0_0 = arith.constant 0 : index
    %0 = vector.load %arg1[%c0, %c0_0] : memref<128x256xf32, #tpu.memory_space<vmem>>, vector<128x256xf32>
    %1 = arith.truncf %0 : vector<128x256xf32> to vector<128x256xbf16>
    %c0_1 = arith.constant 0 : index
    %c0_2 = arith.constant 0 : index
    %2 = vector.load %arg2[%c0_1, %c0_2] : memref<256x512xbf16, #tpu.memory_space<vmem>>, vector<256x512xbf16>
    %cst = arith.constant dense<0.000000e+00> : vector<128x512xf32>
    %3 = tpu.matmul %1, %2, %cst {dimension_numbers = #tpu.dot_dimension_numbers<[1], [0], [0], [1], [0, 0, 1, 1], [], []>} : vector<128x256xbf16>, vector<256x512xbf16>, vector<128x512xf32> -> vector<128x512xf32>
    %cst_3 = arith.constant dense<0.000000e+00> : vector<512xf32>
    %4 = vector.multi_reduction <add>, %3, %cst_3 [0] : vector<128x512xf32> to vector<512xf32>
    %5 = vector.shape_cast %4 : vector<512xf32> to vector<1x512xf32>
    %6 = vector.shape_cast %5 : vector<1x512xf32> to vector<1x1x512xf32>
    %c0_4 = arith.constant 0 : index
    %c0_5 = arith.constant 0 : index
    %c0_6 = arith.constant 0 : index
    %7 = vector.load %arg4[%c0_4, %c0_5, %c0_6] : memref<1x1x512xf32, #tpu.memory_space<vmem>>, vector<1x1x512xf32>
    tpu.vector_store %arg4[%c0_4, %c0_5, %c0_6], %6 {strides = array<i32>} : memref<1x1x512xf32, #tpu.memory_space<vmem>>, vector<1x1x512xf32>,
    %8 = arith.mulf %3, %3 : vector<128x512xf32>
    %cst_7 = arith.constant dense<0.000000e+00> : vector<512xf32>
    %9 = vector.multi_reduction <add>, %8, %cst_7 [0] : vector<128x512xf32> to vector<512xf32>
    %10 = vector.shape_cast %9 : vector<512xf32> to vector<1x512xf32>
    %11 = vector.shape_cast %10 : vector<1x512xf32> to vector<1x1x512xf32>
    %c0_8 = arith.constant 0 : index
    %c0_9 = arith.constant 0 : index
    %c0_10 = arith.constant 0 : index
    %12 = vector.load %arg5[%c0_8, %c0_9, %c0_10] : memref<1x1x512xf32, #tpu.memory_space<vmem>>, vector<1x1x512xf32>
    tpu.vector_store %arg5[%c0_8, %c0_9, %c0_10], %11 {strides = array<i32>} : memref<1x1x512xf32, #tpu.memory_space<vmem>>, vector<1x1x512xf32>,
    %13 = arith.truncf %3 : vector<128x512xf32> to vector<128x512xbf16>
    %c0_11 = arith.constant 0 : index
    %c0_12 = arith.constant 0 : index
    %14 = vector.load %arg3[%c0_11, %c0_12] : memref<128x512xbf16, #tpu.memory_space<vmem>>, vector<128x512xbf16>
    tpu.vector_store %arg3[%c0_11, %c0_12], %13 {strides = array<i32>} : memref<128x512xbf16, #tpu.memory_space<vmem>>, vector<128x512xbf16>,
    return
  }
  func.func @transform_0(%arg0: i32) -> (i32, i32) {
    %c0_i32 = arith.constant 0 : i32
    %c0_i32_0 = arith.constant 0 : i32
    return %arg0, %c0_i32 : i32, i32
  }
  func.func @transform_1(%arg0: i32) -> (i32, i32) {
    %c0_i32 = arith.constant 0 : i32
    %c0_i32_0 = arith.constant 0 : i32
    %c0_i32_1 = arith.constant 0 : i32
    return %c0_i32, %c0_i32_0 : i32, i32
  }
  func.func @transform_2(%arg0: i32) -> (i32, i32) {
    %c0_i32 = arith.constant 0 : i32
    %c0_i32_0 = arith.constant 0 : i32
    return %arg0, %c0_i32 : i32, i32
  }
  func.func @transform_3(%arg0: i32) -> (i32, i32, i32) {
    %c0_i32 = arith.constant 0 : i32
    %c0_i32_0 = arith.constant 0 : i32
    %c0_i32_1 = arith.constant 0 : i32
    return %arg0, %c0_i32, %c0_i32_0 : i32, i32, i32
  }
  func.func @transform_4(%arg0: i32) -> (i32, i32, i32) {
    %c0_i32 = arith.constant 0 : i32
    %c0_i32_0 = arith.constant 0 : i32
    %c0_i32_1 = arith.constant 0 : i32
    return %arg0, %c0_i32, %c0_i32_0 : i32, i32, i32
  }
}

</mosaic_0001>

<llo_original>
// kernel: tpu_custom_call.1
$region0: #{tpu_custom_call.1}
  #allocation0 [shape = 'u32[]', space=smem, size = 0x4, offset = 0x4, fixed_abs, tag = 'smem constant byte address 0x4 - core index']
  #allocation1 [shape = 'u32[72,128]{1,0:T(1,128)}', space=vmem, size = 0x9000, scoped, tag = 'internal scratch']
  %s0 = inlined_call_operand.hbm [shape: f32[256,256], index: 0, kind: input, shape index: {}]
  %s1 = inlined_call_operand.hbm [shape: bf16[256,512], index: 1, kind: input, shape index: {}]
  %s2 = inlined_call_operand.hbm [shape: bf16[256,512], index: 2, kind: output, shape index: {0}]
  %s3 = inlined_call_operand.hbm [shape: f32[2,1,512], index: 3, kind: output, shape index: {1}]
  %s4 = inlined_call_operand.hbm [shape: f32[2,1,512], index: 4, kind: output, shape index: {2}]
  %5 = xla_tuple %s2, %s3, %s4
  %s6 = sld [smem:[#allocation0]]
  $region65: #{tpu_custom_call.1} parent=0
    _
  %s8 = ssub.s32 1, %s6
  %s9 = scalar_select 0, %s8, %s6
  $region1: #{tpu_custom_call.1} parent=0
    #allocation2 [shape = 'u8[262144]{0}', space=vmem, size = 0x40000, scoped, tag = 'input window, operand 0']
    #allocation3 [shape = 's32[2]{0}', space=sflag, size = 0x8, scoped, tag = 'scoped memory for tpu_custom_call.1']
    #allocation4 [shape = 's32[2]{0}', space=sflag, size = 0x8, scoped, tag = 'scoped memory for tpu_custom_call.1']
    #allocation5 [shape = 'u8[262144]{0}', space=vmem, size = 0x40000, scoped, tag = 'input window, operand 1, single buffered']
    #allocation6 [shape = 's32[1]{0}', space=sflag, size = 0x4, scoped, tag = 'scoped memory for tpu_custom_call.1']
    #allocation7 [shape = 'u8[262144]{0}', space=vmem, size = 0x40000, scoped, tag = 'output window, operand 0']
    #allocation8 [shape = 'u8[4096]{0}', space=vmem, size = 0x1000, scoped, tag = 'output window, operand 1']
    #allocation9 [shape = 's32[2]{0}', space=sflag, size = 0x8, scoped, tag = 'scoped memory for tpu_custom_call.1']
    #allocation10 [shape = 'u8[4096]{0}', space=vmem, size = 0x1000, scoped, tag = 'output window, operand 2']
    %10 = vsyncpa [#allocation3], 0
    %s11 = scalar_lea.sflag [#allocation3], 1
    %12 = vsyncpa %s11, 0
    %13 = vsyncpa [#allocation6], 0
    %14 = vsyncpa [#allocation4], 0
    %s15 = scalar_lea.sflag [#allocation4], 1
    %16 = vsyncpa %s15, 0
    %17 = vsyncpa [#allocation9], 0
    %s18 = scalar_lea.sflag [#allocation9], 1
    %19 = vsyncpa %s18, 0
    loop: start=0, step=1, limit=4
    $region2: #{tpu_custom_call.1} parent=1 // loop_pre_header
      _
    $region3: #{tpu_custom_call.1} parent=1 // loop_header
      %s21 = sphi 0, %s25
      %p22 = scmp.ge.s32.totalorder %s21, 4
      %s31 = sphi 0, %s33
      %s34 = sphi 0, %s31
      %s35 = sphi 0, %s34
      %s51 = sphi 0, %s35
      %s55 = sphi 0, %s55
      %s57 = sphi 0, %s55
      %s58 = sphi 0, %s57
      %s72 = sphi 0, %s58
      %s78 = sphi 0, %s80
      %s81 = sphi 0, %s78
      %s82 = sphi 0, %s81
      %s98 = sphi 0, %s82
      %s104 = sphi 0, %s106
      %s107 = sphi 0, %s104
      %s108 = sphi 0, %s107
      %s124 = sphi 0, %s108
      %s130 = sphi 0, %s132
      %s133 = sphi 0, %s130
      %s134 = sphi 0, %s133
      %s150 = sphi 0, %s134
    $region4: #{tpu_custom_call.1} parent=1 // loop_header_branch
      %24 = sbr.rel (%p22) target = $region8
    $region5: #{tpu_custom_call.1} parent=1 // loop_body
      %s26 = ssub.s32 %s21, 1
      %s27 = ssub.s32 %s21, 2
      %s28 = sadd.s32 %s21, 1
      %s29 = ssub.s32 %s21, %s28
      %p30 = scmp.eq.s32.totalorder %s29, 0
      %s32 = sadd.s32 %s31, 1
      %s33 = scalar_select %p30, %s31, %s32
      %p36 = pneg %p30
      %p37 = scmp.eq.s32.totalorder %s21, 1
      %p38 = por %p36, %p37
      %p39 = scmp.ne.s32.totalorder %s31, %s34
      %p40 = scmp.eq.s32.totalorder %s21, 0
      %p41 = por %p39, %p40
      %p42 = scmp.ne.s32.totalorder %s31, %s34
      %p43 = scmp.eq.s32.totalorder %s26, 1
      %p44 = por %p42, %p43
      %p45 = scmp.ne.s32.totalorder %s34, %s35
      %p46 = scmp.eq.s32.totalorder %s26, 0
      %p47 = por %p45, %p46
      %p48 = scmp.ne.s32.totalorder %s34, %s35
      %p49 = scmp.eq.s32.totalorder %s27, 1
      %p50 = por %p48, %p49
      %p52 = scmp.ne.s32.totalorder %s35, %s51
      %p53 = scmp.eq.s32.totalorder %s27, 0
      %p54 = por %p52, %p53
      %s56 = sadd.s32 %s55, 1
      %p59 = scmp.eq.s32.totalorder %s21, 1
      %p60 = scmp.ne.s32.totalorder %s55, %s57
      %p61 = scmp.eq.s32.totalorder %s21, 0
      %p62 = por %p60, %p61
      %p63 = scmp.ne.s32.totalorder %s55, %s57
      %p64 = scmp.eq.s32.totalorder %s26, 1
      %p65 = por %p63, %p64
      %p66 = scmp.ne.s32.totalorder %s57, %s58
      %p67 = scmp.eq.s32.totalorder %s26, 0
      %p68 = por %p66, %p67
      %p69 = scmp.ne.s32.totalorder %s57, %s58
      %p70 = scmp.eq.s32.totalorder %s27, 1
      %p71 = por %p69, %p70
      %p73 = scmp.ne.s32.totalorder %s58, %s72
      %p74 = scmp.eq.s32.totalorder %s27, 0
      %p75 = por %p73, %p74
      %s76 = ssub.s32 %s21, %s28
      %p77 = scmp.eq.s32.totalorder %s76, 0
      %s79 = sadd.s32 %s78, 1
      %s80 = scalar_select %p77, %s78, %s79
      %p83 = pneg %p77
      %p84 = scmp.eq.s32.totalorder %s21, 1
      %p85 = por %p83, %p84
      %p86 = scmp.ne.s32.totalorder %s78, %s81
      %p87 = scmp.eq.s32.totalorder %s21, 0
      %p88 = por %p86, %p87
      %p89 = scmp.ne.s32.totalorder %s78, %s81
      %p90 = scmp.eq.s32.totalorder %s26, 1
      %p91 = por %p89, %p90
      %p92 = scmp.ne.s32.totalorder %s81, %s82
      %p93 = scmp.eq.s32.totalorder %s26, 0
      %p94 = por %p92, %p93
      %p95 = scmp.ne.s32.totalorder %s81, %s82
      %p96 = scmp.eq.s32.totalorder %s27, 1
      %p97 = por %p95, %p96
      %p99 = scmp.ne.s32.totalorder %s82, %s98
      %p100 = scmp.eq.s32.totalorder %s27, 0
      %p101 = por %p99, %p100
      %s102 = ssub.s32 %s21, %s28
      %p103 = scmp.eq.s32.totalorder %s102, 0
      %s105 = sadd.s32 %s104, 1
      %s106 = scalar_select %p103, %s104, %s105
      %p109 = pneg %p103
      %p110 = scmp.eq.s32.totalorder %s21, 1
      %p111 = por %p109, %p110
      %p112 = scmp.ne.s32.totalorder %s104, %s107
      %p113 = scmp.eq.s32.totalorder %s21, 0
      %p114 = por %p112, %p113
      %p115 = scmp.ne.s32.totalorder %s104, %s107
      %p116 = scmp.eq.s32.totalorder %s26, 1
      %p117 = por %p115, %p116
      %p118 = scmp.ne.s32.totalorder %s107, %s108
      %p119 = scmp.eq.s32.totalorder %s26, 0
      %p120 = por %p118, %p119
      %p121 = scmp.ne.s32.totalorder %s107, %s108
      %p122 = scmp.eq.s32.totalorder %s27, 1
      %p123 = por %p121, %p122
      %p125 = scmp.ne.s32.totalorder %s108, %s124
      %p126 = scmp.eq.s32.totalorder %s27, 0
      %p127 = por %p125, %p126
      %s128 = ssub.s32 %s21, %s28
      %p129 = scmp.eq.s32.totalorder %s128, 0
      %s131 = sadd.s32 %s130, 1
      %s132 = scalar_select %p129, %s130, %s131
      %p135 = pneg %p129
      %p136 = scmp.eq.s32.totalorder %s21, 1
      %p137 = por %p135, %p136
      %p138 = scmp.ne.s32.totalorder %s130, %s133
      %p139 = scmp.eq.s32.totalorder %s21, 0
      %p140 = por %p138, %p139
      %p141 = scmp.ne.s32.totalorder %s130, %s133
      %p142 = scmp.eq.s32.totalorder %s26, 1
      %p143 = por %p141, %p142
      %p144 = scmp.ne.s32.totalorder %s133, %s134
      %p145 = scmp.eq.s32.totalorder %s26, 0
      %p146 = por %p144, %p145
      %p147 = scmp.ne.s32.totalorder %s133, %s134
      %p148 = scmp.eq.s32.totalorder %s27, 1
      %p149 = por %p147, %p148
      %p151 = scmp.ne.s32.totalorder %s134, %s150
      %p152 = scmp.eq.s32.totalorder %s27, 0
      %p153 = por %p151, %p152
      %p154 = scmp.le.s32.totalorder 1, %s21
      %p155 = scmp.lt.s32.totalorder %s21, 3
      %p156 = pnand %p154, %p155
      %p157 = pneg %p156
      // Predicated region
      $region9: #{tpu_custom_call.1} parent=5 // pred_check
        _
      $region10: #{tpu_custom_call.1} parent=5 // pred_check_branch
        %159 = sbr.rel (%p156) target = $region12
      $region11: #{tpu_custom_call.1} parent=5 // pred_region
        %s160 = ssub.s32 %s21, 1
        // Predicated region
        $region13: #{tpu_custom_call.1} parent=11 // pred_check
          %p161 = pneg %p68
        $region14: #{tpu_custom_call.1} parent=11 // pred_check_branch
          %163 = sbr.rel (%p161) target = $region16
        $region15: #{tpu_custom_call.1} parent=11 // pred_region
          %165 = vsyncadd [#allocation6], 0
          %s166 = sshll.u32 %s1, 4
          %s167 = int_to_ptr.hbm [resolvable:$true] %s166
          %s168 = sshll.u32 [#allocation5], 4
          %s169 = int_to_ptr.vmem [resolvable:$true] %s168
          %174 = dma.hbm_to_vmem [thread:$0]  %s167, 8192, %s169, [#allocation6], 256, 256, 16
        $region16: #{tpu_custom_call.1} parent=11 // pred_fallthru
          _
      $region12: #{tpu_custom_call.1} parent=5 // pred_fallthru
        _
      %p175 = scmp.lt.s32.totalorder %s21, 2
      // Predicated region
      $region17: #{tpu_custom_call.1} parent=5 // pred_check
        %p176 = pneg %p175
      $region18: #{tpu_custom_call.1} parent=5 // pred_check_branch
        %178 = sbr.rel (%p176) target = $region20
      $region19: #{tpu_custom_call.1} parent=5 // pred_region
        // Predicated region
        $region21: #{tpu_custom_call.1} parent=19 // pred_check
          %p179 = pneg %p41
        $region22: #{tpu_custom_call.1} parent=19 // pred_check_branch
          %181 = sbr.rel (%p179) target = $region24
        $region23: #{tpu_custom_call.1} parent=19 // pred_region
          %s182 = sand.u32 %s31, 1
          %s183 = scalar_lea.sflag [#allocation3], %s182
          %s184 = sand.u32 %s31, 1
          %s185 = smul.addr %s184, 256
          %s186 = scalar_lea.vmem [#allocation2], %s185
          %s187 = smul.u32 16, %s21
          %189 = vsyncadd %s183, 0
          %s190 = smul.addr %s187, 2
          %s191 = smul.addr %s190, 8
          %s192 = scalar_lea.hbm %s0, %s191
          %s193 = sshll.u32 %s192, 4
          %s194 = int_to_ptr.hbm [resolvable:$true] %s193
          %s195 = sshll.u32 %s186, 4
          %s196 = int_to_ptr.vmem [resolvable:$true] %s195
          %201 = dma.hbm_to_vmem [thread:$0]  %s194, 4096, %s196, %s183, 256, 256, 16
        $region24: #{tpu_custom_call.1} parent=19 // pred_fallthru
          _
      $region20: #{tpu_custom_call.1} parent=5 // pred_fallthru
        _
      %p202 = scmp.le.s32.totalorder 1, %s21
      %p203 = scmp.lt.s32.totalorder %s21, 3
      %p204 = pnand %p202, %p203
      %p205 = pneg %p204
      // Predicated region
      $region25: #{tpu_custom_call.1} parent=5 // pred_check
        _
      $region26: #{tpu_custom_call.1} parent=5 // pred_check_branch
        %207 = sbr.rel (%p204) target = $region28
      $region27: #{tpu_custom_call.1} parent=5 // pred_region
        %s208 = ssub.s32 %s21, 1
        %s209 = sand.u32 %s34, 1
        %s210 = scalar_lea.sflag [#allocation3], %s209
        %s211 = sand.u32 %s34, 1
        %s212 = smul.addr %s211, 256
        %s213 = scalar_lea.vmem [#allocation2], %s212
        // Predicated region
        $region29: #{tpu_custom_call.1} parent=27 // pred_check
          %p214 = pneg %p47
        $region30: #{tpu_custom_call.1} parent=27 // pred_check_branch
          %216 = sbr.rel (%p214) target = $region32
        $region31: #{tpu_custom_call.1} parent=27 // pred_region
          %218 = dma.done %s210, 4096
        $region32: #{tpu_custom_call.1} parent=27 // pred_fallthru
          _
        // Predicated region
        $region33: #{tpu_custom_call.1} parent=27 // pred_check
          %p219 = pneg %p68
        $region34: #{tpu_custom_call.1} parent=27 // pred_check_branch
          %221 = sbr.rel (%p219) target = $region36
        $region35: #{tpu_custom_call.1} parent=27 // pred_region
          %223 = dma.done [#allocation6], 8192
        $region36: #{tpu_custom_call.1} parent=27 // pred_fallthru
          _
        %s224 = sand.u32 %s34, 1
        %s225 = scalar_lea.sflag [#allocation3], %s224
        %s226 = sand.u32 %s34, 1
        %s227 = smul.addr %s226, 256
        %s228 = scalar_lea.vmem [#allocation2], %s227
        %p229 = pneg %p47
        %p230 = pneg %p44
        %p231 = pneg %p68
        %p232 = pneg %p65
        %p233 = pneg %p94
        %p234 = pneg %p91
        %s235 = sand.u32 %s81, 1
        %s236 = scalar_lea.sflag [#allocation4], %s235
        %s237 = sand.u32 %s81, 1
        %s238 = smul.addr %s237, 256
        %s239 = scalar_lea.vmem [#allocation7], %s238
        %p240 = pneg %p120
        %p241 = pneg %p117
        %s242 = sand.u32 %s26, 1
        %s243 = scalar_lea.sflag [#allocation9], %s242
        %s244 = sand.u32 %s107, 1
        %s245 = smul.addr %s244, 4
        %s246 = scalar_lea.vmem [#allocation8], %s245
        %p247 = pneg %p146
        %p248 = pneg %p143
        %s249 = sand.u32 %s26, 1
        %s250 = scalar_lea.sflag [#allocation9], %s249
        %s251 = sand.u32 %s133, 1
        %s252 = smul.addr %s251, 4
        %s253 = scalar_lea.vmem [#allocation10], %s252
        %s254 = smul.u32 16, %s26
        %s255 = smul.u32 16, %s26
        %v256 = vld [vmem:[%s213] sm:$0xff]
        %v257 = vld [vmem:[%s213 + $0x8] sm:$0xff]
        %v258 = vld [vmem:[%s213 + $0x10] sm:$0xff]
        %v259 = vld [vmem:[%s213 + $0x18] sm:$0xff]
        %v260 = vld [vmem:[%s213 + $0x20] sm:$0xff]
        %v261 = vld [vmem:[%s213 + $0x28] sm:$0xff]
        %v262 = vld [vmem:[%s213 + $0x30] sm:$0xff]
        %v263 = vld [vmem:[%s213 + $0x38] sm:$0xff]
        %v264 = vld [vmem:[%s213 + $0x40] sm:$0xff]
        %v265 = vld [vmem:[%s213 + $0x48] sm:$0xff]
        %v266 = vld [vmem:[%s213 + $0x50] sm:$0xff]
        %v267 = vld [vmem:[%s213 + $0x58] sm:$0xff]
        %v268 = vld [vmem:[%s213 + $0x60] sm:$0xff]
        %v269 = vld [vmem:[%s213 + $0x68] sm:$0xff]
        %v270 = vld [vmem:[%s213 + $0x70] sm:$0xff]
        %v271 = vld [vmem:[%s213 + $0x78] sm:$0xff]
        %v272 = vld [vmem:[%s213 + $0x80] sm:$0xff]
        %v273 = vld [vmem:[%s213 + $0x88] sm:$0xff]
        %v274 = vld [vmem:[%s213 + $0x90] sm:$0xff]
        %v275 = vld [vmem:[%s213 + $0x98] sm:$0xff]
        %v276 = vld [vmem:[%s213 + $0xa0] sm:$0xff]
        %v277 = vld [vmem:[%s213 + $0xa8] sm:$0xff]
        %v278 = vld [vmem:[%s213 + $0xb0] sm:$0xff]
        %v279 = vld [vmem:[%s213 + $0xb8] sm:$0xff]
        %v280 = vld [vmem:[%s213 + $0xc0] sm:$0xff]
        %v281 = vld [vmem:[%s213 + $0xc8] sm:$0xff]
        %v282 = vld [vmem:[%s213 + $0xd0] sm:$0xff]
        %v283 = vld [vmem:[%s213 + $0xd8] sm:$0xff]
        %v284 = vld [vmem:[%s213 + $0xe0] sm:$0xff]
        %v285 = vld [vmem:[%s213 + $0xe8] sm:$0xff]
        %v286 = vld [vmem:[%s213 + $0xf0] sm:$0xff]
        %v287 = vld [vmem:[%s213 + $0xf8] sm:$0xff]
        %v288 = vpack.c.bf16 %v258, %v256
        %v289 = vpack.c.bf16 %v259, %v257
        %v290 = vpack.c.bf16 %v262, %v260
        %v291 = vpack.c.bf16 %v263, %v261
        %v292 = vpack.c.bf16 %v266, %v264
        %v293 = vpack.c.bf16 %v267, %v265
        %v294 = vpack.c.bf16 %v270, %v268
        %v295 = vpack.c.bf16 %v271, %v269
        %v296 = vpack.c.bf16 %v274, %v272
        %v297 = vpack.c.bf16 %v275, %v273
        %v298 = vpack.c.bf16 %v278, %v276
        %v299 = vpack.c.bf16 %v279, %v277
        %v300 = vpack.c.bf16 %v282, %v280
        %v301 = vpack.c.bf16 %v283, %v281
        %v302 = vpack.c.bf16 %v286, %v284
        %v303 = vpack.c.bf16 %v287, %v285
        %v304 = vld [vmem:[#allocation5] sm:$0xff]
        %v305 = vld [vmem:[#allocation5 + $0x8] sm:$0xff]
        %v306 = vld [vmem:[#allocation5 + $0x10] sm:$0xff]
        %v307 = vld [vmem:[#allocation5 + $0x18] sm:$0xff]
        %v308 = vld [vmem:[#allocation5 + $0x20] sm:$0xff]
        %v309 = vld [vmem:[#allocation5 + $0x28] sm:$0xff]
        %v310 = vld [vmem:[#allocation5 + $0x30] sm:$0xff]
        %v311 = vld [vmem:[#allocation5 + $0x38] sm:$0xff]
        %v312 = vld [vmem:[#allocation5 + $0x40] sm:$0xff]
        %v313 = vld [vmem:[#allocation5 + $0x48] sm:$0xff]
        %v314 = vld [vmem:[#allocation5 + $0x50] sm:$0xff]
        %v315 = vld [vmem:[#allocation5 + $0x58] sm:$0xff]
        %v316 = vld [vmem:[#allocation5 + $0x60] sm:$0xff]
        %v317 = vld [vmem:[#allocation5 + $0x68] sm:$0xff]
        %v318 = vld [vmem:[#allocation5 + $0x70] sm:$0xff]
        %v319 = vld [vmem:[#allocation5 + $0x78] sm:$0xff]
        %v320 = vld [vmem:[#allocation5 + $0x80] sm:$0xff]
        %v321 = vld [vmem:[#allocation5 + $0x88] sm:$0xff]
        %v322 = vld [vmem:[#allocation5 + $0x90] sm:$0xff]
        %v323 = vld [vmem:[#allocation5 + $0x98] sm:$0xff]
        %v324 = vld [vmem:[#allocation5 + $0xa0] sm:$0xff]
        %v325 = vld [vmem:[#allocation5 + $0xa8] sm:$0xff]
        %v326 = vld [vmem:[#allocation5 + $0xb0] sm:$0xff]
        %v327 = vld [vmem:[#allocation5 + $0xb8] sm:$0xff]
        %v328 = vld [vmem:[#allocation5 + $0xc0] sm:$0xff]
        %v329 = vld [vmem:[#allocation5 + $0xc8] sm:$0xff]
        %v330 = vld [vmem:[#allocation5 + $0xd0] sm:$0xff]
        %v331 = vld [vmem:[#allocation5 + $0xd8] sm:$0xff]
        %v332 = vld [vmem:[#allocation5 + $0xe0] sm:$0xff]
        %v333 = vld [vmem:[#allocation5 + $0xe8] sm:$0xff]
        %v334 = vld [vmem:[#allocation5 + $0xf0] sm:$0xff]
        %v335 = vld [vmem:[#allocation5 + $0xf8] sm:$0xff]
        %v336 = vld [vmem:[#allocation5 + $0x100] sm:$0xff]
        %v337 = vld [vmem:[#allocation5 + $0x108] sm:$0xff]
        %v338 = vld [vmem:[#allocation5 + $0x110] sm:$0xff]
        %v339 = vld [vmem:[#allocation5 + $0x118] sm:$0xff]
        %v340 = vld [vmem:[#allocation5 + $0x120] sm:$0xff]
        %v341 = vld [vmem:[#allocation5 + $0x128] sm:$0xff]
        %v342 = vld [vmem:[#allocation5 + $0x130] sm:$0xff]
        %v343 = vld [vmem:[#allocation5 + $0x138] sm:$0xff]
        %v344 = vld [vmem:[#allocation5 + $0x140] sm:$0xff]
        %v345 = vld [vmem:[#allocation5 + $0x148] sm:$0xff]
        %v346 = vld [vmem:[#allocation5 + $0x150] sm:$0xff]
        %v347 = vld [vmem:[#allocation5 + $0x158] sm:$0xff]
        %v348 = vld [vmem:[#allocation5 + $0x160] sm:$0xff]
        %v349 = vld [vmem:[#allocation5 + $0x168] sm:$0xff]
        %v350 = vld [vmem:[#allocation5 + $0x170] sm:$0xff]
        %v351 = vld [vmem:[#allocation5 + $0x178] sm:$0xff]
        %v352 = vld [vmem:[#allocation5 + $0x180] sm:$0xff]
        %v353 = vld [vmem:[#allocation5 + $0x188] sm:$0xff]
        %v354 = vld [vmem:[#allocation5 + $0x190] sm:$0xff]
        %v355 = vld [vmem:[#allocation5 + $0x198] sm:$0xff]
        %v356 = vld [vmem:[#allocation5 + $0x1a0] sm:$0xff]
        %v357 = vld [vmem:[#allocation5 + $0x1a8] sm:$0xff]
        %v358 = vld [vmem:[#allocation5 + $0x1b0] sm:$0xff]
        %v359 = vld [vmem:[#allocation5 + $0x1b8] sm:$0xff]
        %v360 = vld [vmem:[#allocation5 + $0x1c0] sm:$0xff]
        %v361 = vld [vmem:[#allocation5 + $0x1c8] sm:$0xff]
        %v362 = vld [vmem:[#allocation5 + $0x1d0] sm:$0xff]
        %v363 = vld [vmem:[#allocation5 + $0x1d8] sm:$0xff]
        %v364 = vld [vmem:[#allocation5 + $0x1e0] sm:$0xff]
        %v365 = vld [vmem:[#allocation5 + $0x1e8] sm:$0xff]
        %v366 = vld [vmem:[#allocation5 + $0x1f0] sm:$0xff]
        %v367 = vld [vmem:[#allocation5 + $0x1f8] sm:$0xff]
        %v432 = vunpack.c.l.b16 %v304
        %v433 = vunpack.c.h.b16 %v304
        %v434 = vunpack.c.l.b16 %v305
        %v435 = vunpack.c.h.b16 %v305
        %v436 = vunpack.c.l.b16 %v306
        %v437 = vunpack.c.h.b16 %v306
        %v438 = vunpack.c.l.b16 %v307
        %v439 = vunpack.c.h.b16 %v307
        %v440 = vunpack.c.l.b16 %v308
        %v441 = vunpack.c.h.b16 %v308
        %v442 = vunpack.c.l.b16 %v309
        %v443 = vunpack.c.h.b16 %v309
        %v444 = vunpack.c.l.b16 %v310
        %v445 = vunpack.c.h.b16 %v310
        %v446 = vunpack.c.l.b16 %v311
        %v447 = vunpack.c.h.b16 %v311
        %v448 = vunpack.c.l.b16 %v312
        %v449 = vunpack.c.h.b16 %v312
        %v450 = vunpack.c.l.b16 %v313
        %v451 = vunpack.c.h.b16 %v313
        %v452 = vunpack.c.l.b16 %v314
        %v453 = vunpack.c.h.b16 %v314
        %v454 = vunpack.c.l.b16 %v315
        %v455 = vunpack.c.h.b16 %v315
        %v456 = vunpack.c.l.b16 %v316
        %v457 = vunpack.c.h.b16 %v316
        %v458 = vunpack.c.l.b16 %v317
        %v459 = vunpack.c.h.b16 %v317
        %v460 = vunpack.c.l.b16 %v318
        %v461 = vunpack.c.h.b16 %v318
        %v462 = vunpack.c.l.b16 %v319
        %v463 = vunpack.c.h.b16 %v319
        %v464 = vunpack.c.l.b16 %v320
        %v465 = vunpack.c.h.b16 %v320
        %v466 = vunpack.c.l.b16 %v321
        %v467 = vunpack.c.h.b16 %v321
        %v468 = vunpack.c.l.b16 %v322
        %v469 = vunpack.c.h.b16 %v322
        %v470 = vunpack.c.l.b16 %v323
        %v471 = vunpack.c.h.b16 %v323
        %v472 = vunpack.c.l.b16 %v324
        %v473 = vunpack.c.h.b16 %v324
        %v474 = vunpack.c.l.b16 %v325
        %v475 = vunpack.c.h.b16 %v325
        %v476 = vunpack.c.l.b16 %v326
        %v477 = vunpack.c.h.b16 %v326
        %v478 = vunpack.c.l.b16 %v327
        %v479 = vunpack.c.h.b16 %v327
        %v480 = vunpack.c.l.b16 %v328
        %v481 = vunpack.c.h.b16 %v328
        %v482 = vunpack.c.l.b16 %v329
        %v483 = vunpack.c.h.b16 %v329
        %v484 = vunpack.c.l.b16 %v330
        %v485 = vunpack.c.h.b16 %v330
        %v486 = vunpack.c.l.b16 %v331
        %v487 = vunpack.c.h.b16 %v331
        %v488 = vunpack.c.l.b16 %v332
        %v489 = vunpack.c.h.b16 %v332
        %v490 = vunpack.c.l.b16 %v333
        %v491 = vunpack.c.h.b16 %v333
        %v492 = vunpack.c.l.b16 %v334
        %v493 = vunpack.c.h.b16 %v334
        %v494 = vunpack.c.l.b16 %v335
        %v495 = vunpack.c.h.b16 %v335
        %v496 = vunpack.c.l.b16 %v336
        %v497 = vunpack.c.h.b16 %v336
        %v498 = vunpack.c.l.b16 %v337
        %v499 = vunpack.c.h.b16 %v337
        %v500 = vunpack.c.l.b16 %v338
        %v501 = vunpack.c.h.b16 %v338
        %v502 = vunpack.c.l.b16 %v339
        %v503 = vunpack.c.h.b16 %v339
        %v504 = vunpack.c.l.b16 %v340
        %v505 = vunpack.c.h.b16 %v340
        %v506 = vunpack.c.l.b16 %v341
        %v507 = vunpack.c.h.b16 %v341
        %v508 = vunpack.c.l.b16 %v342
        %v509 = vunpack.c.h.b16 %v342
        %v510 = vunpack.c.l.b16 %v343
        %v511 = vunpack.c.h.b16 %v343
        %v512 = vunpack.c.l.b16 %v344
        %v513 = vunpack.c.h.b16 %v344
        %v514 = vunpack.c.l.b16 %v345
        %v515 = vunpack.c.h.b16 %v345
        %v516 = vunpack.c.l.b16 %v346
        %v517 = vunpack.c.h.b16 %v346
        %v518 = vunpack.c.l.b16 %v347
        %v519 = vunpack.c.h.b16 %v347
        %v520 = vunpack.c.l.b16 %v348
        %v521 = vunpack.c.h.b16 %v348
        %v522 = vunpack.c.l.b16 %v349
        %v523 = vunpack.c.h.b16 %v349
        %v524 = vunpack.c.l.b16 %v350
        %v525 = vunpack.c.h.b16 %v350
        %v526 = vunpack.c.l.b16 %v351
        %v527 = vunpack.c.h.b16 %v351
        %v528 = vunpack.c.l.b16 %v352
        %v529 = vunpack.c.h.b16 %v352
        %v530 = vunpack.c.l.b16 %v353
        %v531 = vunpack.c.h.b16 %v353
        %v532 = vunpack.c.l.b16 %v354
        %v533 = vunpack.c.h.b16 %v354
        %v534 = vunpack.c.l.b16 %v355
        %v535 = vunpack.c.h.b16 %v355
        %v536 = vunpack.c.l.b16 %v356
        %v537 = vunpack.c.h.b16 %v356
        %v538 = vunpack.c.l.b16 %v357
        %v539 = vunpack.c.h.b16 %v357
        %v540 = vunpack.c.l.b16 %v358
        %v541 = vunpack.c.h.b16 %v358
        %v542 = vunpack.c.l.b16 %v359
        %v543 = vunpack.c.h.b16 %v359
        %v544 = vunpack.c.l.b16 %v360
        %v545 = vunpack.c.h.b16 %v360
        %v546 = vunpack.c.l.b16 %v361
        %v547 = vunpack.c.h.b16 %v361
        %v548 = vunpack.c.l.b16 %v362
        %v549 = vunpack.c.h.b16 %v362
        %v550 = vunpack.c.l.b16 %v363
        %v551 = vunpack.c.h.b16 %v363
        %v552 = vunpack.c.l.b16 %v364
        %v553 = vunpack.c.h.b16 %v364
        %v554 = vunpack.c.l.b16 %v365
        %v555 = vunpack.c.h.b16 %v365
        %v556 = vunpack.c.l.b16 %v366
        %v557 = vunpack.c.h.b16 %v366
        %v558 = vunpack.c.l.b16 %v367
        %v559 = vunpack.c.h.b16 %v367
        %v560 = vpack.c.b16 %v436, %v432
        %v561 = vpack.c.b16 %v437, %v433
        %v562 = vpack.c.b16 %v438, %v434
        %v563 = vpack.c.b16 %v439, %v435
        %v564 = vpack.c.b16 %v444, %v440
        %v565 = vpack.c.b16 %v445, %v441
        %v566 = vpack.c.b16 %v446, %v442
        %v567 = vpack.c.b16 %v447, %v443
        %v568 = vpack.c.b16 %v452, %v448
        %v569 = vpack.c.b16 %v453, %v449
        %v570 = vpack.c.b16 %v454, %v450
        %v571 = vpack.c.b16 %v455, %v451
        %v572 = vpack.c.b16 %v460, %v456
        %v573 = vpack.c.b16 %v461, %v457
        %v574 = vpack.c.b16 %v462, %v458
        %v575 = vpack.c.b16 %v463, %v459
        %v576 = vpack.c.b16 %v468, %v464
        %v577 = vpack.c.b16 %v469, %v465
        %v578 = vpack.c.b16 %v470, %v466
        %v579 = vpack.c.b16 %v471, %v467
        %v580 = vpack.c.b16 %v476, %v472
        %v581 = vpack.c.b16 %v477, %v473
        %v582 = vpack.c.b16 %v478, %v474
        %v583 = vpack.c.b16 %v479, %v475
        %v584 = vpack.c.b16 %v484, %v480
        %v585 = vpack.c.b16 %v485, %v481
        %v586 = vpack.c.b16 %v486, %v482
        %v587 = vpack.c.b16 %v487, %v483
        %v588 = vpack.c.b16 %v492, %v488
        %v589 = vpack.c.b16 %v493, %v489
        %v590 = vpack.c.b16 %v494, %v490
        %v591 = vpack.c.b16 %v495, %v491
        %v592 = vpack.c.b16 %v500, %v496
        %v593 = vpack.c.b16 %v501, %v497
        %v594 = vpack.c.b16 %v502, %v498
        %v595 = vpack.c.b16 %v503, %v499
        %v596 = vpack.c.b16 %v508, %v504
        %v597 = vpack.c.b16 %v509, %v505
        %v598 = vpack.c.b16 %v510, %v506
        %v599 = vpack.c.b16 %v511, %v507
        %v600 = vpack.c.b16 %v516, %v512
        %v601 = vpack.c.b16 %v517, %v513
        %v602 = vpack.c.b16 %v518, %v514
        %v603 = vpack.c.b16 %v519, %v515
        %v604 = vpack.c.b16 %v524, %v520
        %v605 = vpack.c.b16 %v525, %v521
        %v606 = vpack.c.b16 %v526, %v522
        %v607 = vpack.c.b16 %v527, %v523
        %v608 = vpack.c.b16 %v532, %v528
        %v609 = vpack.c.b16 %v533, %v529
        %v610 = vpack.c.b16 %v534, %v530
        %v611 = vpack.c.b16 %v535, %v531
        %v612 = vpack.c.b16 %v540, %v536
        %v613 = vpack.c.b16 %v541, %v537
        %v614 = vpack.c.b16 %v542, %v538
        %v615 = vpack.c.b16 %v543, %v539
        %v616 = vpack.c.b16 %v548, %v544
        %v617 = vpack.c.b16 %v549, %v545
        %v618 = vpack.c.b16 %v550, %v546
        %v619 = vpack.c.b16 %v551, %v547
        %v620 = vpack.c.b16 %v556, %v552
        %v621 = vpack.c.b16 %v557, %v553
        %v622 = vpack.c.b16 %v558, %v554
        %v623 = vpack.c.b16 %v559, %v555
        %688 = vmatpush.bf16.msra.mxu0 %v588
        %689 = vmatpush.bf16.msra.mxu0 %v584
        %690 = vmatpush.bf16.msra.mxu0 %v580
        %691 = vmatpush.bf16.msra.mxu0 %v576
        %692 = vmatpush.bf16.msra.mxu0 %v572
        %693 = vmatpush.bf16.msra.mxu0 %v568
        %694 = vmatpush.bf16.msra.mxu0 %v564
        %695 = vmatpush.bf16.msra.mxu0 %v560
        %696 = vmatmul.bf16.gmra.mxu0 %v288
        %v697 = vpop.f32.mrf.mxu0
        %v698 = vadd.f32 0.0, %v697
        %v699 = vpop.f32.mrf.mxu0
        %v700 = vadd.f32 0.0, %v699
        %701 = vmatmul.bf16.gmra.mxu0 %v290
        %v702 = vpop.f32.mrf.mxu0
        %v703 = vadd.f32 0.0, %v702
        %v704 = vpop.f32.mrf.mxu0
        %v705 = vadd.f32 0.0, %v704
        %706 = vmatmul.bf16.gmra.mxu0 %v292
        %v707 = vpop.f32.mrf.mxu0
        %v708 = vadd.f32 0.0, %v707
        %v709 = vpop.f32.mrf.mxu0
        %v710 = vadd.f32 0.0, %v709
        %711 = vmatmul.bf16.gmra.mxu0 %v294
        %v712 = vpop.f32.mrf.mxu0
        %v713 = vadd.f32 0.0, %v712
        %v714 = vpop.f32.mrf.mxu0
        %v715 = vadd.f32 0.0, %v714
        %716 = vmatmul.bf16.gmra.mxu0 %v296
        %v717 = vpop.f32.mrf.mxu0
        %v718 = vadd.f32 0.0, %v717
        %v719 = vpop.f32.mrf.mxu0
        %v720 = vadd.f32 0.0, %v719
        %721 = vmatmul.bf16.gmra.mxu0 %v298
        %v722 = vpop.f32.mrf.mxu0
        %v723 = vadd.f32 0.0, %v722
        %v724 = vpop.f32.mrf.mxu0
        %v725 = vadd.f32 0.0, %v724
        %726 = vmatmul.bf16.gmra.mxu0 %v300
        %v727 = vpop.f32.mrf.mxu0
        %v728 = vadd.f32 0.0, %v727
        %v729 = vpop.f32.mrf.mxu0
        %v730 = vadd.f32 0.0, %v729
        %731 = vmatmul.bf16.gmra.mxu0 %v302
        %v732 = vpop.f32.mrf.mxu0
        %v733 = vadd.f32 0.0, %v732
        %v734 = vpop.f32.mrf.mxu0
        %v735 = vadd.f32 0.0, %v734
        %736 = vdwg.mxu0
        %737 = vmatpush.bf16.msra.mxu0 %v620
        %738 = vmatpush.bf16.msra.mxu0 %v616
        %739 = vmatpush.bf16.msra.mxu0 %v612
        %740 = vmatpush.bf16.msra.mxu0 %v608
        %741 = vmatpush.bf16.msra.mxu0 %v604
        %742 = vmatpush.bf16.msra.mxu0 %v600
        %743 = vmatpush.bf16.msra.mxu0 %v596
        %744 = vmatpush.bf16.msra.mxu0 %v592
        %745 = vmatmul.bf16.gmra.mxu0 %v289
        %v746 = vpop.f32.mrf.mxu0
        %v747 = vadd.f32 %v698, %v746
        %v748 = vpop.f32.mrf.mxu0
        %v749 = vadd.f32 %v700, %v748
        %750 = vmatmul.bf16.gmra.mxu0 %v291
        %v751 = vpop.f32.mrf.mxu0
        %v752 = vadd.f32 %v703, %v751
        %v753 = vpop.f32.mrf.mxu0
        %v754 = vadd.f32 %v705, %v753
        %755 = vmatmul.bf16.gmra.mxu0 %v293
        %v756 = vpop.f32.mrf.mxu0
        %v757 = vadd.f32 %v708, %v756
        %v758 = vpop.f32.mrf.mxu0
        %v759 = vadd.f32 %v710, %v758
        %760 = vmatmul.bf16.gmra.mxu0 %v295
        %v761 = vpop.f32.mrf.mxu0
        %v762 = vadd.f32 %v713, %v761
        %v763 = vpop.f32.mrf.mxu0
        %v764 = vadd.f32 %v715, %v763
        %765 = vmatmul.bf16.gmra.mxu0 %v297
        %v766 = vpop.f32.mrf.mxu0
        %v767 = vadd.f32 %v718, %v766
        %v768 = vpop.f32.mrf.mxu0
        %v769 = vadd.f32 %v720, %v768
        %770 = vmatmul.bf16.gmra.mxu0 %v299
        %v771 = vpop.f32.mrf.mxu0
        %v772 = vadd.f32 %v723, %v771
        %v773 = vpop.f32.mrf.mxu0
        %v774 = vadd.f32 %v725, %v773
        %775 = vmatmul.bf16.gmra.mxu0 %v301
        %v776 = vpop.f32.mrf.mxu0
        %v777 = vadd.f32 %v728, %v776
        %v778 = vpop.f32.mrf.mxu0
        %v779 = vadd.f32 %v730, %v778
        %780 = vmatmul.bf16.gmra.mxu0 %v303
        %v781 = vpop.f32.mrf.mxu0
        %v782 = vadd.f32 %v733, %v781
        %v783 = vpop.f32.mrf.mxu0
        %v784 = vadd.f32 %v735, %v783
        %785 = vdwg.mxu0
        %786 = vmatpush.bf16.msra.mxu0 %v589
        %787 = vmatpush.bf16.msra.mxu0 %v585
        %788 = vmatpush.bf16.msra.mxu0 %v581
        %789 = vmatpush.bf16.msra.mxu0 %v577
        %790 = vmatpush.bf16.msra.mxu0 %v573
        %791 = vmatpush.bf16.msra.mxu0 %v569
        %792 = vmatpush.bf16.msra.mxu0 %v565
        %793 = vmatpush.bf16.msra.mxu0 %v561
        %794 = vmatmul.bf16.gmra.mxu0 %v288
        %v795 = vpop.f32.mrf.mxu0
        %v796 = vadd.f32 0.0, %v795
        %v797 = vpop.f32.mrf.mxu0
        %v798 = vadd.f32 0.0, %v797
        %799 = vmatmul.bf16.gmra.mxu0 %v290
        %v800 = vpop.f32.mrf.mxu0
        %v801 = vadd.f32 0.0, %v800
        %v802 = vpop.f32.mrf.mxu0
        %v803 = vadd.f32 0.0, %v802
        %804 = vmatmul.bf16.gmra.mxu0 %v292
        %v805 = vpop.f32.mrf.mxu0
        %v806 = vadd.f32 0.0, %v805
        %v807 = vpop.f32.mrf.mxu0
        %v808 = vadd.f32 0.0, %v807
        %809 = vmatmul.bf16.gmra.mxu0 %v294
        %v810 = vpop.f32.mrf.mxu0
        %v811 = vadd.f32 0.0, %v810
        %v812 = vpop.f32.mrf.mxu0
        %v813 = vadd.f32 0.0, %v812
        %814 = vmatmul.bf16.gmra.mxu0 %v296
        %v815 = vpop.f32.mrf.mxu0
        %v816 = vadd.f32 0.0, %v815
        %v817 = vpop.f32.mrf.mxu0
        %v818 = vadd.f32 0.0, %v817
        %819 = vmatmul.bf16.gmra.mxu0 %v298
        %v820 = vpop.f32.mrf.mxu0
        %v821 = vadd.f32 0.0, %v820
        %v822 = vpop.f32.mrf.mxu0
        %v823 = vadd.f32 0.0, %v822
        %824 = vmatmul.bf16.gmra.mxu0 %v300
        %v825 = vpop.f32.mrf.mxu0
        %v826 = vadd.f32 0.0, %v825
        %v827 = vpop.f32.mrf.mxu0
        %v828 = vadd.f32 0.0, %v827
        %829 = vmatmul.bf16.gmra.mxu0 %v302
        %v830 = vpop.f32.mrf.mxu0
        %v831 = vadd.f32 0.0, %v830
        %v832 = vpop.f32.mrf.mxu0
        %v833 = vadd.f32 0.0, %v832
        %834 = vdwg.mxu0
        %835 = vmatpush.bf16.msra.mxu0 %v621
        %836 = vmatpush.bf16.msra.mxu0 %v617
        %837 = vmatpush.bf16.msra.mxu0 %v613
        %838 = vmatpush.bf16.msra.mxu0 %v609
        %839 = vmatpush.bf16.msra.mxu0 %v605
        %840 = vmatpush.bf16.msra.mxu0 %v601
        %841 = vmatpush.bf16.msra.mxu0 %v597
        %842 = vmatpush.bf16.msra.mxu0 %v593
        %843 = vmatmul.bf16.gmra.mxu0 %v289
        %v844 = vpop.f32.mrf.mxu0
        %v845 = vadd.f32 %v796, %v844
        %v846 = vpop.f32.mrf.mxu0
        %v847 = vadd.f32 %v798, %v846
        %848 = vmatmul.bf16.gmra.mxu0 %v291
        %v849 = vpop.f32.mrf.mxu0
        %v850 = vadd.f32 %v801, %v849
        %v851 = vpop.f32.mrf.mxu0
        %v852 = vadd.f32 %v803, %v851
        %853 = vmatmul.bf16.gmra.mxu0 %v293
        %v854 = vpop.f32.mrf.mxu0
        %v855 = vadd.f32 %v806, %v854
        %v856 = vpop.f32.mrf.mxu0
        %v857 = vadd.f32 %v808, %v856
        %858 = vmatmul.bf16.gmra.mxu0 %v295
        %v859 = vpop.f32.mrf.mxu0
        %v860 = vadd.f32 %v811, %v859
        %v861 = vpop.f32.mrf.mxu0
        %v862 = vadd.f32 %v813, %v861
        %863 = vmatmul.bf16.gmra.mxu0 %v297
        %v864 = vpop.f32.mrf.mxu0
        %v865 = vadd.f32 %v816, %v864
        %v866 = vpop.f32.mrf.mxu0
        %v867 = vadd.f32 %v818, %v866
        %868 = vmatmul.bf16.gmra.mxu0 %v299
        %v869 = vpop.f32.mrf.mxu0
        %v870 = vadd.f32 %v821, %v869
        %v871 = vpop.f32.mrf.mxu0
        %v872 = vadd.f32 %v823, %v871
        %873 = vmatmul.bf16.gmra.mxu0 %v301
        %v874 = vpop.f32.mrf.mxu0
        %v875 = vadd.f32 %v826, %v874
        %v876 = vpop.f32.mrf.mxu0
        %v877 = vadd.f32 %v828, %v876
        %878 = vmatmul.bf16.gmra.mxu0 %v303
        %v879 = vpop.f32.mrf.mxu0
        %v880 = vadd.f32 %v831, %v879
        %v881 = vpop.f32.mrf.mxu0
        %v882 = vadd.f32 %v833, %v881
        %883 = vdwg.mxu0
        %884 = vmatpush.bf16.msra.mxu0 %v590
        %885 = vmatpush.bf16.msra.mxu0 %v586
        %886 = vmatpush.bf16.msra.mxu0 %v582
        %887 = vmatpush.bf16.msra.mxu0 %v578
        %888 = vmatpush.bf16.msra.mxu0 %v574
        %889 = vmatpush.bf16.msra.mxu0 %v570
        %890 = vmatpush.bf16.msra.mxu0 %v566
        %891 = vmatpush.bf16.msra.mxu0 %v562
        %892 = vmatmul.bf16.gmra.mxu0 %v288
        %v893 = vpop.f32.mrf.mxu0
        %v894 = vadd.f32 0.0, %v893
        %v895 = vpop.f32.mrf.mxu0
        %v896 = vadd.f32 0.0, %v895
        %897 = vmatmul.bf16.gmra.mxu0 %v290
        %v898 = vpop.f32.mrf.mxu0
        %v899 = vadd.f32 0.0, %v898
        %v900 = vpop.f32.mrf.mxu0
        %v901 = vadd.f32 0.0, %v900
        %902 = vmatmul.bf16.gmra.mxu0 %v292
        %v903 = vpop.f32.mrf.mxu0
        %v904 = vadd.f32 0.0, %v903
        %v905 = vpop.f32.mrf.mxu0
        %v906 = vadd.f32 0.0, %v905
        %907 = vmatmul.bf16.gmra.mxu0 %v294
        %v908 = vpop.f32.mrf.mxu0
        %v909 = vadd.f32 0.0, %v908
        %v910 = vpop.f32.mrf.mxu0
        %v911 = vadd.f32 0.0, %v910
        %912 = vmatmul.bf16.gmra.mxu0 %v296
        %v913 = vpop.f32.mrf.mxu0
        %v914 = vadd.f32 0.0, %v913
        %v915 = vpop.f32.mrf.mxu0
        %v916 = vadd.f32 0.0, %v915
        %917 = vmatmul.bf16.gmra.mxu0 %v298
        %v918 = vpop.f32.mrf.mxu0
        %v919 = vadd.f32 0.0, %v918
        %v920 = vpop.f32.mrf.mxu0
        %v921 = vadd.f32 0.0, %v920
        %922 = vmatmul.bf16.gmra.mxu0 %v300
        %v923 = vpop.f32.mrf.mxu0
        %v924 = vadd.f32 0.0, %v923
        %v925 = vpop.f32.mrf.mxu0
        %v926 = vadd.f32 0.0, %v925
        %927 = vmatmul.bf16.gmra.mxu0 %v302
        %v928 = vpop.f32.mrf.mxu0
        %v929 = vadd.f32 0.0, %v928
        %v930 = vpop.f32.mrf.mxu0
        %v931 = vadd.f32 0.0, %v930
        %932 = vdwg.mxu0
        %933 = vmatpush.bf16.msra.mxu0 %v622
        %934 = vmatpush.bf16.msra.mxu0 %v618
        %935 = vmatpush.bf16.msra.mxu0 %v614
        %936 = vmatpush.bf16.msra.mxu0 %v610
        %937 = vmatpush.bf16.msra.mxu0 %v606
        %938 = vmatpush.bf16.msra.mxu0 %v602
        %939 = vmatpush.bf16.msra.mxu0 %v598
        %940 = vmatpush.bf16.msra.mxu0 %v594
        %941 = vmatmul.bf16.gmra.mxu0 %v289
        %v942 = vpop.f32.mrf.mxu0
        %v943 = vadd.f32 %v894, %v942
        %v944 = vpop.f32.mrf.mxu0
        %v945 = vadd.f32 %v896, %v944
        %946 = vmatmul.bf16.gmra.mxu0 %v291
        %v947 = vpop.f32.mrf.mxu0
        %v948 = vadd.f32 %v899, %v947
        %v949 = vpop.f32.mrf.mxu0
        %v950 = vadd.f32 %v901, %v949
        %951 = vmatmul.bf16.gmra.mxu0 %v293
        %v952 = vpop.f32.mrf.mxu0
        %v953 = vadd.f32 %v904, %v952
        %v954 = vpop.f32.mrf.mxu0
        %v955 = vadd.f32 %v906, %v954
        %956 = vmatmul.bf16.gmra.mxu0 %v295
        %v957 = vpop.f32.mrf.mxu0
        %v958 = vadd.f32 %v909, %v957
        %v959 = vpop.f32.mrf.mxu0
        %v960 = vadd.f32 %v911, %v959
        %961 = vmatmul.bf16.gmra.mxu0 %v297
        %v962 = vpop.f32.mrf.mxu0
        %v963 = vadd.f32 %v914, %v962
        %v964 = vpop.f32.mrf.mxu0
        %v965 = vadd.f32 %v916, %v964
        %966 = vmatmul.bf16.gmra.mxu0 %v299
        %v967 = vpop.f32.mrf.mxu0
        %v968 = vadd.f32 %v919, %v967
        %v969 = vpop.f32.mrf.mxu0
        %v970 = vadd.f32 %v921, %v969
        %971 = vmatmul.bf16.gmra.mxu0 %v301
        %v972 = vpop.f32.mrf.mxu0
        %v973 = vadd.f32 %v924, %v972
        %v974 = vpop.f32.mrf.mxu0
        %v975 = vadd.f32 %v926, %v974
        %976 = vmatmul.bf16.gmra.mxu0 %v303
        %v977 = vpop.f32.mrf.mxu0
        %v978 = vadd.f32 %v929, %v977
        %v979 = vpop.f32.mrf.mxu0
        %v980 = vadd.f32 %v931, %v979
        %981 = vdwg.mxu0
        %982 = vmatpush.bf16.msra.mxu0 %v591
        %983 = vmatpush.bf16.msra.mxu0 %v587
        %984 = vmatpush.bf16.msra.mxu0 %v583
        %985 = vmatpush.bf16.msra.mxu0 %v579
        %986 = vmatpush.bf16.msra.mxu0 %v575
        %987 = vmatpush.bf16.msra.mxu0 %v571
        %988 = vmatpush.bf16.msra.mxu0 %v567
        %989 = vmatpush.bf16.msra.mxu0 %v563
        %990 = vmatmul.bf16.gmra.mxu0 %v288
        %v991 = vpop.f32.mrf.mxu0
        %v992 = vadd.f32 0.0, %v991
        %v993 = vpop.f32.mrf.mxu0
        %v994 = vadd.f32 0.0, %v993
        %995 = vmatmul.bf16.gmra.mxu0 %v290
        %v996 = vpop.f32.mrf.mxu0
        %v997 = vadd.f32 0.0, %v996
        %v998 = vpop.f32.mrf.mxu0
        %v999 = vadd.f32 0.0, %v998
        %1000 = vmatmul.bf16.gmra.mxu0 %v292
        %v1001 = vpop.f32.mrf.mxu0
        %v1002 = vadd.f32 0.0, %v1001
        %v1003 = vpop.f32.mrf.mxu0
        %v1004 = vadd.f32 0.0, %v1003
        %1005 = vmatmul.bf16.gmra.mxu0 %v294
        %v1006 = vpop.f32.mrf.mxu0
        %v1007 = vadd.f32 0.0, %v1006
        %v1008 = vpop.f32.mrf.mxu0
        %v1009 = vadd.f32 0.0, %v1008
        %1010 = vmatmul.bf16.gmra.mxu0 %v296
        %v1011 = vpop.f32.mrf.mxu0
        %v1012 = vadd.f32 0.0, %v1011
        %v1013 = vpop.f32.mrf.mxu0
        %v1014 = vadd.f32 0.0, %v1013
        %1015 = vmatmul.bf16.gmra.mxu0 %v298
        %v1016 = vpop.f32.mrf.mxu0
        %v1017 = vadd.f32 0.0, %v1016
        %v1018 = vpop.f32.mrf.mxu0
        %v1019 = vadd.f32 0.0, %v1018
        %1020 = vmatmul.bf16.gmra.mxu0 %v300
        %v1021 = vpop.f32.mrf.mxu0
        %v1022 = vadd.f32 0.0, %v1021
        %v1023 = vpop.f32.mrf.mxu0
        %v1024 = vadd.f32 0.0, %v1023
        %1025 = vmatmul.bf16.gmra.mxu0 %v302
        %v1026 = vpop.f32.mrf.mxu0
        %v1027 = vadd.f32 0.0, %v1026
        %v1028 = vpop.f32.mrf.mxu0
        %v1029 = vadd.f32 0.0, %v1028
        %1030 = vdwg.mxu0
        %1031 = vmatpush.bf16.msra.mxu0 %v623
        %1032 = vmatpush.bf16.msra.mxu0 %v619
        %1033 = vmatpush.bf16.msra.mxu0 %v615
        %1034 = vmatpush.bf16.msra.mxu0 %v611
        %1035 = vmatpush.bf16.msra.mxu0 %v607
        %1036 = vmatpush.bf16.msra.mxu0 %v603
        %1037 = vmatpush.bf16.msra.mxu0 %v599
        %1038 = vmatpush.bf16.msra.mxu0 %v595
        %1039 = vmatmul.bf16.gmra.mxu0 %v289
        %v1040 = vpop.f32.mrf.mxu0
        %v1041 = vadd.f32 %v992, %v1040
        %v1042 = vpop.f32.mrf.mxu0
        %v1043 = vadd.f32 %v994, %v1042
        %1044 = vmatmul.bf16.gmra.mxu0 %v291
        %v1045 = vpop.f32.mrf.mxu0
        %v1046 = vadd.f32 %v997, %v1045
        %v1047 = vpop.f32.mrf.mxu0
        %v1048 = vadd.f32 %v999, %v1047
        %1049 = vmatmul.bf16.gmra.mxu0 %v293
        %v1050 = vpop.f32.mrf.mxu0
        %v1051 = vadd.f32 %v1002, %v1050
        %v1052 = vpop.f32.mrf.mxu0
        %v1053 = vadd.f32 %v1004, %v1052
        %1054 = vmatmul.bf16.gmra.mxu0 %v295
        %v1055 = vpop.f32.mrf.mxu0
        %v1056 = vadd.f32 %v1007, %v1055
        %v1057 = vpop.f32.mrf.mxu0
        %v1058 = vadd.f32 %v1009, %v1057
        %1059 = vmatmul.bf16.gmra.mxu0 %v297
        %v1060 = vpop.f32.mrf.mxu0
        %v1061 = vadd.f32 %v1012, %v1060
        %v1062 = vpop.f32.mrf.mxu0
        %v1063 = vadd.f32 %v1014, %v1062
        %1064 = vmatmul.bf16.gmra.mxu0 %v299
        %v1065 = vpop.f32.mrf.mxu0
        %v1066 = vadd.f32 %v1017, %v1065
        %v1067 = vpop.f32.mrf.mxu0
        %v1068 = vadd.f32 %v1019, %v1067
        %1069 = vmatmul.bf16.gmra.mxu0 %v301
        %v1070 = vpop.f32.mrf.mxu0
        %v1071 = vadd.f32 %v1022, %v1070
        %v1072 = vpop.f32.mrf.mxu0
        %v1073 = vadd.f32 %v1024, %v1072
        %1074 = vmatmul.bf16.gmra.mxu0 %v303
        %v1075 = vpop.f32.mrf.mxu0
        %v1076 = vadd.f32 %v1027, %v1075
        %v1077 = vpop.f32.mrf.mxu0
        %v1078 = vadd.f32 %v1029, %v1077
        %1079 = vdwg.mxu0
        %v1080 = vadd.f32 %v747, %v749
        %v1081 = vadd.f32 %v1080, %v752
        %v1082 = vadd.f32 %v1081, %v754
        %v1083 = vadd.f32 %v1082, %v757
        %v1084 = vadd.f32 %v1083, %v759
        %v1085 = vadd.f32 %v1084, %v762
        %v1086 = vadd.f32 %v1085, %v764
        %v1087 = vadd.f32 %v1086, %v767
        %v1088 = vadd.f32 %v1087, %v769
        %v1089 = vadd.f32 %v1088, %v772
        %v1090 = vadd.f32 %v1089, %v774
        %v1091 = vadd.f32 %v1090, %v777
        %v1092 = vadd.f32 %v1091, %v779
        %v1093 = vadd.f32 %v1092, %v782
        %v1094 = vadd.f32 %v1093, %v784
        %v1095 = vrot.slane %v1094, 4
        %v1096 = vadd.f32 %v1094, %v1095
        %v1097 = vrot.slane %v1096, 2
        %v1098 = vadd.f32 %v1096, %v1097
        %v1099 = vrot.slane %v1098, 1
        %v1100 = vadd.f32 %v1098, %v1099
        %v1101 = vadd.f32 %v845, %v847
        %v1102 = vadd.f32 %v1101, %v850
        %v1103 = vadd.f32 %v1102, %v852
        %v1104 = vadd.f32 %v1103, %v855
        %v1105 = vadd.f32 %v1104, %v857
        %v1106 = vadd.f32 %v1105, %v860
        %v1107 = vadd.f32 %v1106, %v862
        %v1108 = vadd.f32 %v1107, %v865
        %v1109 = vadd.f32 %v1108, %v867
        %v1110 = vadd.f32 %v1109, %v870
        %v1111 = vadd.f32 %v1110, %v872
        %v1112 = vadd.f32 %v1111, %v875
        %v1113 = vadd.f32 %v1112, %v877
        %v1114 = vadd.f32 %v1113, %v880
        %v1115 = vadd.f32 %v1114, %v882
        %v1116 = vrot.slane %v1115, 4
        %v1117 = vadd.f32 %v1115, %v1116
        %v1118 = vrot.slane %v1117, 2
        %v1119 = vadd.f32 %v1117, %v1118
        %v1120 = vrot.slane %v1119, 1
        %v1121 = vadd.f32 %v1119, %v1120
        %v1122 = vadd.f32 %v943, %v945
        %v1123 = vadd.f32 %v1122, %v948
        %v1124 = vadd.f32 %v1123, %v950
        %v1125 = vadd.f32 %v1124, %v953
        %v1126 = vadd.f32 %v1125, %v955
        %v1127 = vadd.f32 %v1126, %v958
        %v1128 = vadd.f32 %v1127, %v960
        %v1129 = vadd.f32 %v1128, %v963
        %v1130 = vadd.f32 %v1129, %v965
        %v1131 = vadd.f32 %v1130, %v968
        %v1132 = vadd.f32 %v1131, %v970
        %v1133 = vadd.f32 %v1132, %v973
        %v1134 = vadd.f32 %v1133, %v975
        %v1135 = vadd.f32 %v1134, %v978
        %v1136 = vadd.f32 %v1135, %v980
        %v1137 = vrot.slane %v1136, 4
        %v1138 = vadd.f32 %v1136, %v1137
        %v1139 = vrot.slane %v1138, 2
        %v1140 = vadd.f32 %v1138, %v1139
        %v1141 = vrot.slane %v1140, 1
        %v1142 = vadd.f32 %v1140, %v1141
        %v1143 = vadd.f32 %v1041, %v1043
        %v1144 = vadd.f32 %v1143, %v1046
        %v1145 = vadd.f32 %v1144, %v1048
        %v1146 = vadd.f32 %v1145, %v1051
        %v1147 = vadd.f32 %v1146, %v1053
        %v1148 = vadd.f32 %v1147, %v1056
        %v1149 = vadd.f32 %v1148, %v1058
        %v1150 = vadd.f32 %v1149, %v1061
        %v1151 = vadd.f32 %v1150, %v1063
        %v1152 = vadd.f32 %v1151, %v1066
        %v1153 = vadd.f32 %v1152, %v1068
        %v1154 = vadd.f32 %v1153, %v1071
        %v1155 = vadd.f32 %v1154, %v1073
        %v1156 = vadd.f32 %v1155, %v1076
        %v1157 = vadd.f32 %v1156, %v1078
        %v1158 = vrot.slane %v1157, 4
        %v1159 = vadd.f32 %v1157, %v1158
        %v1160 = vrot.slane %v1159, 2
        %v1161 = vadd.f32 %v1159, %v1160
        %v1162 = vrot.slane %v1161, 1
        %v1163 = vadd.f32 %v1161, %v1162
        %v1168 = vrot.slane %v1121, 7
        %v1169 = vrot.slane %v1142, 6
        %v1170 = vrot.slane %v1163, 5
        %vm1171 = vcmask 1040384
        %v1172 = vsel %vm1171, %v1100, %v1168
        %vm1173 = vcmask 1042434
        %v1174 = vsel %vm1173, %v1169, %v1170
        %vm1175 = vcmask 1041408
        %v1176 = vsel %vm1175, %v1172, %v1174
        %v1178 = vlaneseq
        %vm1179 = vcmp.ge.s32.totalorder %v1178, 0
        %vm1180 = vcmp.lt.s32.totalorder %v1178, 512
        %vm1181 = vmand %vm1179, %vm1180
        %1182 = vst.msk [vmem:[%s246] sm:$0xf] %vm1181, %v1176
        %v1183 = vmul.f32 %v747, %v747
        %v1184 = vmul.f32 %v845, %v845
        %v1185 = vmul.f32 %v943, %v943
        %v1186 = vmul.f32 %v1041, %v1041
        %v1187 = vmul.f32 %v749, %v749
        %v1188 = vmul.f32 %v847, %v847
        %v1189 = vmul.f32 %v945, %v945
        %v1190 = vmul.f32 %v1043, %v1043
        %v1191 = vmul.f32 %v752, %v752
        %v1192 = vmul.f32 %v850, %v850
        %v1193 = vmul.f32 %v948, %v948
        %v1194 = vmul.f32 %v1046, %v1046
        %v1195 = vmul.f32 %v754, %v754
        %v1196 = vmul.f32 %v852, %v852
        %v1197 = vmul.f32 %v950, %v950
        %v1198 = vmul.f32 %v1048, %v1048
        %v1199 = vmul.f32 %v757, %v757
        %v1200 = vmul.f32 %v855, %v855
        %v1201 = vmul.f32 %v953, %v953
        %v1202 = vmul.f32 %v1051, %v1051
        %v1203 = vmul.f32 %v759, %v759
        %v1204 = vmul.f32 %v857, %v857
        %v1205 = vmul.f32 %v955, %v955
        %v1206 = vmul.f32 %v1053, %v1053
        %v1207 = vmul.f32 %v762, %v762
        %v1208 = vmul.f32 %v860, %v860
        %v1209 = vmul.f32 %v958, %v958
        %v1210 = vmul.f32 %v1056, %v1056
        %v1211 = vmul.f32 %v764, %v764
        %v1212 = vmul.f32 %v862, %v862
        %v1213 = vmul.f32 %v960, %v960
        %v1214 = vmul.f32 %v1058, %v1058
        %v1215 = vmul.f32 %v767, %v767
        %v1216 = vmul.f32 %v865, %v865
        %v1217 = vmul.f32 %v963, %v963
        %v1218 = vmul.f32 %v1061, %v1061
        %v1219 = vmul.f32 %v769, %v769
        %v1220 = vmul.f32 %v867, %v867
        %v1221 = vmul.f32 %v965, %v965
        %v1222 = vmul.f32 %v1063, %v1063
        %v1223 = vmul.f32 %v772, %v772
        %v1224 = vmul.f32 %v870, %v870
        %v1225 = vmul.f32 %v968, %v968
        %v1226 = vmul.f32 %v1066, %v1066
        %v1227 = vmul.f32 %v774, %v774
        %v1228 = vmul.f32 %v872, %v872
        %v1229 = vmul.f32 %v970, %v970
        %v1230 = vmul.f32 %v1068, %v1068
        %v1231 = vmul.f32 %v777, %v777
        %v1232 = vmul.f32 %v875, %v875
        %v1233 = vmul.f32 %v973, %v973
        %v1234 = vmul.f32 %v1071, %v1071
        %v1235 = vmul.f32 %v779, %v779
        %v1236 = vmul.f32 %v877, %v877
        %v1237 = vmul.f32 %v975, %v975
        %v1238 = vmul.f32 %v1073, %v1073
        %v1239 = vmul.f32 %v782, %v782
        %v1240 = vmul.f32 %v880, %v880
        %v1241 = vmul.f32 %v978, %v978
        %v1242 = vmul.f32 %v1076, %v1076
        %v1243 = vmul.f32 %v784, %v784
        %v1244 = vmul.f32 %v882, %v882
        %v1245 = vmul.f32 %v980, %v980
        %v1246 = vmul.f32 %v1078, %v1078
        %v1247 = vadd.f32 %v1183, %v1187
        %v1248 = vadd.f32 %v1247, %v1191
        %v1249 = vadd.f32 %v1248, %v1195
        %v1250 = vadd.f32 %v1249, %v1199
        %v1251 = vadd.f32 %v1250, %v1203
        %v1252 = vadd.f32 %v1251, %v1207
        %v1253 = vadd.f32 %v1252, %v1211
        %v1254 = vadd.f32 %v1253, %v1215
        %v1255 = vadd.f32 %v1254, %v1219
        %v1256 = vadd.f32 %v1255, %v1223
        %v1257 = vadd.f32 %v1256, %v1227
        %v1258 = vadd.f32 %v1257, %v1231
        %v1259 = vadd.f32 %v1258, %v1235
        %v1260 = vadd.f32 %v1259, %v1239
        %v1261 = vadd.f32 %v1260, %v1243
        %v1262 = vrot.slane %v1261, 4
        %v1263 = vadd.f32 %v1261, %v1262
        %v1264 = vrot.slane %v1263, 2
        %v1265 = vadd.f32 %v1263, %v1264
        %v1266 = vrot.slane %v1265, 1
        %v1267 = vadd.f32 %v1265, %v1266
        %v1268 = vadd.f32 %v1184, %v1188
        %v1269 = vadd.f32 %v1268, %v1192
        %v1270 = vadd.f32 %v1269, %v1196
        %v1271 = vadd.f32 %v1270, %v1200
        %v1272 = vadd.f32 %v1271, %v1204
        %v1273 = vadd.f32 %v1272, %v1208
        %v1274 = vadd.f32 %v1273, %v1212
        %v1275 = vadd.f32 %v1274, %v1216
        %v1276 = vadd.f32 %v1275, %v1220
        %v1277 = vadd.f32 %v1276, %v1224
        %v1278 = vadd.f32 %v1277, %v1228
        %v1279 = vadd.f32 %v1278, %v1232
        %v1280 = vadd.f32 %v1279, %v1236
        %v1281 = vadd.f32 %v1280, %v1240
        %v1282 = vadd.f32 %v1281, %v1244
        %v1283 = vrot.slane %v1282, 4
        %v1284 = vadd.f32 %v1282, %v1283
        %v1285 = vrot.slane %v1284, 2
        %v1286 = vadd.f32 %v1284, %v1285
        %v1287 = vrot.slane %v1286, 1
        %v1288 = vadd.f32 %v1286, %v1287
        %v1289 = vadd.f32 %v1185, %v1189
        %v1290 = vadd.f32 %v1289, %v1193
        %v1291 = vadd.f32 %v1290, %v1197
        %v1292 = vadd.f32 %v1291, %v1201
        %v1293 = vadd.f32 %v1292, %v1205
        %v1294 = vadd.f32 %v1293, %v1209
        %v1295 = vadd.f32 %v1294, %v1213
        %v1296 = vadd.f32 %v1295, %v1217
        %v1297 = vadd.f32 %v1296, %v1221
        %v1298 = vadd.f32 %v1297, %v1225
        %v1299 = vadd.f32 %v1298, %v1229
        %v1300 = vadd.f32 %v1299, %v1233
        %v1301 = vadd.f32 %v1300, %v1237
        %v1302 = vadd.f32 %v1301, %v1241
        %v1303 = vadd.f32 %v1302, %v1245
        %v1304 = vrot.slane %v1303, 4
        %v1305 = vadd.f32 %v1303, %v1304
        %v1306 = vrot.slane %v1305, 2
        %v1307 = vadd.f32 %v1305, %v1306
        %v1308 = vrot.slane %v1307, 1
        %v1309 = vadd.f32 %v1307, %v1308
        %v1310 = vadd.f32 %v1186, %v1190
        %v1311 = vadd.f32 %v1310, %v1194
        %v1312 = vadd.f32 %v1311, %v1198
        %v1313 = vadd.f32 %v1312, %v1202
        %v1314 = vadd.f32 %v1313, %v1206
        %v1315 = vadd.f32 %v1314, %v1210
        %v1316 = vadd.f32 %v1315, %v1214
        %v1317 = vadd.f32 %v1316, %v1218
        %v1318 = vadd.f32 %v1317, %v1222
        %v1319 = vadd.f32 %v1318, %v1226
        %v1320 = vadd.f32 %v1319, %v1230
        %v1321 = vadd.f32 %v1320, %v1234
        %v1322 = vadd.f32 %v1321, %v1238
        %v1323 = vadd.f32 %v1322, %v1242
        %v1324 = vadd.f32 %v1323, %v1246
        %v1325 = vrot.slane %v1324, 4
        %v1326 = vadd.f32 %v1324, %v1325
        %v1327 = vrot.slane %v1326, 2
        %v1328 = vadd.f32 %v1326, %v1327
        %v1329 = vrot.slane %v1328, 1
        %v1330 = vadd.f32 %v1328, %v1329
        %v1335 = vrot.slane %v1288, 7
        %v1336 = vrot.slane %v1309, 6
        %v1337 = vrot.slane %v1330, 5
        %v1338 = vsel %vm1171, %v1267, %v1335
        %v1339 = vsel %vm1173, %v1336, %v1337
        %v1340 = vsel %vm1175, %v1338, %v1339
        %1342 = vst.msk [vmem:[%s253] sm:$0xf] %vm1181, %v1340
        %v1343 = vpack.c.bf16 %v845, %v747
        %v1344 = vpack.c.bf16 %v1041, %v943
        %v1345 = vpack.c.bf16 %v847, %v749
        %v1346 = vpack.c.bf16 %v1043, %v945
        %v1347 = vpack.c.bf16 %v850, %v752
        %v1348 = vpack.c.bf16 %v1046, %v948
        %v1349 = vpack.c.bf16 %v852, %v754
        %v1350 = vpack.c.bf16 %v1048, %v950
        %v1351 = vpack.c.bf16 %v855, %v757
        %v1352 = vpack.c.bf16 %v1051, %v953
        %v1353 = vpack.c.bf16 %v857, %v759
        %v1354 = vpack.c.bf16 %v1053, %v955
        %v1355 = vpack.c.bf16 %v860, %v762
        %v1356 = vpack.c.bf16 %v1056, %v958
        %v1357 = vpack.c.bf16 %v862, %v764
        %v1358 = vpack.c.bf16 %v1058, %v960
        %v1359 = vpack.c.bf16 %v865, %v767
        %v1360 = vpack.c.bf16 %v1061, %v963
        %v1361 = vpack.c.bf16 %v867, %v769
        %v1362 = vpack.c.bf16 %v1063, %v965
        %v1363 = vpack.c.bf16 %v870, %v772
        %v1364 = vpack.c.bf16 %v1066, %v968
        %v1365 = vpack.c.bf16 %v872, %v774
        %v1366 = vpack.c.bf16 %v1068, %v970
        %v1367 = vpack.c.bf16 %v875, %v777
        %v1368 = vpack.c.bf16 %v1071, %v973
        %v1369 = vpack.c.bf16 %v877, %v779
        %v1370 = vpack.c.bf16 %v1073, %v975
        %v1371 = vpack.c.bf16 %v880, %v782
        %v1372 = vpack.c.bf16 %v1076, %v978
        %v1373 = vpack.c.bf16 %v882, %v784
        %v1374 = vpack.c.bf16 %v1078, %v980
        %1375 = vst [vmem:[%s239] sm:$0xff] %v1343
        %1376 = vst [vmem:[%s239 + $0x8] sm:$0xff] %v1344
        %1377 = vst [vmem:[%s239 + $0x10] sm:$0xff] %v1345
        %1378 = vst [vmem:[%s239 + $0x18] sm:$0xff] %v1346
        %1379 = vst [vmem:[%s239 + $0x20] sm:$0xff] %v1347
        %1380 = vst [vmem:[%s239 + $0x28] sm:$0xff] %v1348
        %1381 = vst [vmem:[%s239 + $0x30] sm:$0xff] %v1349
        %1382 = vst [vmem:[%s239 + $0x38] sm:$0xff] %v1350
        %1383 = vst [vmem:[%s239 + $0x40] sm:$0xff] %v1351
        %1384 = vst [vmem:[%s239 + $0x48] sm:$0xff] %v1352
        %1385 = vst [vmem:[%s239 + $0x50] sm:$0xff] %v1353
        %1386 = vst [vmem:[%s239 + $0x58] sm:$0xff] %v1354
        %1387 = vst [vmem:[%s239 + $0x60] sm:$0xff] %v1355
        %1388 = vst [vmem:[%s239 + $0x68] sm:$0xff] %v1356
        %1389 = vst [vmem:[%s239 + $0x70] sm:$0xff] %v1357
        %1390 = vst [vmem:[%s239 + $0x78] sm:$0xff] %v1358
        %1391 = vst [vmem:[%s239 + $0x80] sm:$0xff] %v1359
        %1392 = vst [vmem:[%s239 + $0x88] sm:$0xff] %v1360
        %1393 = vst [vmem:[%s239 + $0x90] sm:$0xff] %v1361
        %1394 = vst [vmem:[%s239 + $0x98] sm:$0xff] %v1362
        %1395 = vst [vmem:[%s239 + $0xa0] sm:$0xff] %v1363
        %1396 = vst [vmem:[%s239 + $0xa8] sm:$0xff] %v1364
        %1397 = vst [vmem:[%s239 + $0xb0] sm:$0xff] %v1365
        %1398 = vst [vmem:[%s239 + $0xb8] sm:$0xff] %v1366
        %1399 = vst [vmem:[%s239 + $0xc0] sm:$0xff] %v1367
        %1400 = vst [vmem:[%s239 + $0xc8] sm:$0xff] %v1368
        %1401 = vst [vmem:[%s239 + $0xd0] sm:$0xff] %v1369
        %1402 = vst [vmem:[%s239 + $0xd8] sm:$0xff] %v1370
        %1403 = vst [vmem:[%s239 + $0xe0] sm:$0xff] %v1371
        %1404 = vst [vmem:[%s239 + $0xe8] sm:$0xff] %v1372
        %1405 = vst [vmem:[%s239 + $0xf0] sm:$0xff] %v1373
        %1406 = vst [vmem:[%s239 + $0xf8] sm:$0xff] %v1374
        %s1407 = sand.u32 %s81, 1
        %s1408 = scalar_lea.sflag [#allocation4], %s1407
        %s1409 = sand.u32 %s81, 1
        %s1410 = smul.addr %s1409, 256
        %s1411 = scalar_lea.vmem [#allocation7], %s1410
        %s1412 = sand.u32 %s26, 1
        %s1413 = scalar_lea.sflag [#allocation9], %s1412
        %s1414 = sand.u32 %s107, 1
        %s1415 = smul.addr %s1414, 4
        %s1416 = scalar_lea.vmem [#allocation8], %s1415
        %s1417 = sand.u32 %s26, 1
        %s1418 = scalar_lea.sflag [#allocation9], %s1417
        %s1419 = sand.u32 %s133, 1
        %s1420 = smul.addr %s1419, 4
        %s1421 = scalar_lea.vmem [#allocation10], %s1420
        // Predicated region
        $region37: #{tpu_custom_call.1} parent=27 // pred_check
          %p1422 = pneg %p91
        $region38: #{tpu_custom_call.1} parent=27 // pred_check_branch
          %1424 = sbr.rel (%p1422) target = $region40
        $region39: #{tpu_custom_call.1} parent=27 // pred_region
          %s1425 = smul.u32 16, %s26
          %1427 = vsyncadd %s1408, 0
          %s1428 = smul.addr %s1425, 4
          %s1429 = smul.addr %s1428, 4
          %s1430 = scalar_lea.hbm %s2, %s1429
          %s1431 = sshll.u32 %s1411, 4
          %s1432 = int_to_ptr.vmem [resolvable:$true] %s1431
          %s1433 = sshll.u32 %s1430, 4
          %s1434 = int_to_ptr.hbm [resolvable:$true] %s1433
          %1439 = dma.vmem_to_hbm [thread:$0]  %s1432, 4096, %s1434, %s1408, 256, 256, 16
        $region40: #{tpu_custom_call.1} parent=27 // pred_fallthru
          _
        // Predicated region
        $region41: #{tpu_custom_call.1} parent=27 // pred_check
          %p1440 = pneg %p117
        $region42: #{tpu_custom_call.1} parent=27 // pred_check_branch
          %1442 = sbr.rel (%p1440) target = $region44
        $region43: #{tpu_custom_call.1} parent=27 // pred_region
          %1444 = vsyncadd %s1413, 0
          %s1445 = smul.addr %s26, 4
          %s1446 = scalar_lea.hbm %s3, %s1445
          %s1448 = sshll.u32 %s1416, 4
          %s1449 = int_to_ptr.vmem [resolvable:$true] %s1448
          %s1450 = sshll.u32 %s1446, 4
          %s1451 = int_to_ptr.hbm [resolvable:$true] %s1450
          %1453 = dma.vmem_to_hbm [thread:$0]  %s1449, 64, %s1451, %s1413
        $region44: #{tpu_custom_call.1} parent=27 // pred_fallthru
          _
        // Predicated region
        $region45: #{tpu_custom_call.1} parent=27 // pred_check
          %p1454 = pneg %p143
        $region46: #{tpu_custom_call.1} parent=27 // pred_check_branch
          %1456 = sbr.rel (%p1454) target = $region48
        $region47: #{tpu_custom_call.1} parent=27 // pred_region
          %1458 = vsyncadd %s1418, 0
          %s1459 = smul.addr %s26, 4
          %s1460 = scalar_lea.hbm %s4, %s1459
          %s1462 = sshll.u32 %s1421, 4
          %s1463 = int_to_ptr.vmem [resolvable:$true] %s1462
          %s1464 = sshll.u32 %s1460, 4
          %s1465 = int_to_ptr.hbm [resolvable:$true] %s1464
          %1467 = dma.vmem_to_hbm [thread:$0]  %s1463, 64, %s1465, %s1418
        $region48: #{tpu_custom_call.1} parent=27 // pred_fallthru
          _
      $region28: #{tpu_custom_call.1} parent=5 // pred_fallthru
        _
      %p1468 = scmp.le.s32.totalorder 2, %s21
      // Predicated region
      $region49: #{tpu_custom_call.1} parent=5 // pred_check
        %p1469 = pneg %p1468
      $region50: #{tpu_custom_call.1} parent=5 // pred_check_branch
        %1471 = sbr.rel (%p1469) target = $region52
      $region51: #{tpu_custom_call.1} parent=5 // pred_region
        %s1472 = ssub.s32 %s21, 2
        // Predicated region
        $region53: #{tpu_custom_call.1} parent=51 // pred_check
          %p1473 = pneg %p97
        $region54: #{tpu_custom_call.1} parent=51 // pred_check_branch
          %1475 = sbr.rel (%p1473) target = $region56
        $region55: #{tpu_custom_call.1} parent=51 // pred_region
          %s1476 = sand.u32 %s82, 1
          %s1477 = scalar_lea.sflag [#allocation4], %s1476
          %s1478 = sand.u32 %s82, 1
          %s1479 = smul.addr %s1478, 256
          %s1480 = scalar_lea.vmem [#allocation7], %s1479
          %1482 = dma.done %s1477, 4096
        $region56: #{tpu_custom_call.1} parent=51 // pred_fallthru
          _
        // Predicated region
        $region57: #{tpu_custom_call.1} parent=51 // pred_check
          %p1483 = pneg %p123
        $region58: #{tpu_custom_call.1} parent=51 // pred_check_branch
          %1485 = sbr.rel (%p1483) target = $region60
        $region59: #{tpu_custom_call.1} parent=51 // pred_region
          %s1486 = sand.u32 %s27, 1
          %s1487 = scalar_lea.sflag [#allocation9], %s1486
          %s1488 = sand.u32 %s108, 1
          %s1489 = smul.addr %s1488, 4
          %s1490 = scalar_lea.vmem [#allocation8], %s1489
          %1492 = dma.done %s1487, 64
        $region60: #{tpu_custom_call.1} parent=51 // pred_fallthru
          _
        // Predicated region
        $region61: #{tpu_custom_call.1} parent=51 // pred_check
          %p1493 = pneg %p149
        $region62: #{tpu_custom_call.1} parent=51 // pred_check_branch
          %1495 = sbr.rel (%p1493) target = $region64
        $region63: #{tpu_custom_call.1} parent=51 // pred_region
          %s1496 = sand.u32 %s27, 1
          %s1497 = scalar_lea.sflag [#allocation9], %s1496
          %s1498 = sand.u32 %s134, 1
          %s1499 = smul.addr %s1498, 4
          %s1500 = scalar_lea.vmem [#allocation10], %s1499
          %1502 = dma.done %s1497, 64
        $region64: #{tpu_custom_call.1} parent=51 // pred_fallthru
          _
      $region52: #{tpu_custom_call.1} parent=5 // pred_fallthru
        _
    $region6: #{tpu_custom_call.1} parent=1 // loop_footer
      %s25 = sadd.s32 1, %s21
    $region7: #{tpu_custom_call.1} parent=1 // loop_footer_branch
      %20 = sbr.rel target = $region3
    $region8: #{tpu_custom_call.1} parent=1 // loop_exit
      _
    %1503 = vsyncpa [#allocation3], 1
    %s1504 = scalar_lea.sflag [#allocation3], 1
    %1505 = vsyncpa %s1504, 1
    %1506 = vsyncpa [#allocation6], 1
    %1507 = vsyncpa [#allocation4], 1
    %s1508 = scalar_lea.sflag [#allocation4], 1
    %1509 = vsyncpa %s1508, 1
    %1510 = vsyncpa [#allocation9], 1
    %s1511 = scalar_lea.sflag [#allocation9], 1
    %1512 = vsyncpa %s1511, 1

</llo_original>
